<compile_context>
chip_gen: v7x
topology: tpu7x:2x2x1
jax: 0.10.0
libtpu: 0.0.40
codegen_flags: <defaults>
</compile_context>

<pallas_src>
import math

import numpy as np
import jax
import jax.numpy as jnp
from jax import lax
from jax.experimental import pallas as pl
from jax.experimental.pallas import tpu as pltpu


def _nearest_src_indices(out_size: int, in_size: int, zoom: float) -> np.ndarray:
    # PyTorch nearest w/ recompute_scale_factor=False: scale = 1/zoom
    idx = np.floor(np.arange(out_size, dtype=np.float64) * (1.0 / zoom)).astype(np.int64)
    return np.minimum(idx, in_size - 1).astype(np.int64)


def _round_up(x: int, m: int) -> int:
    return -(-x // m) * m


def _sublane_multiple(dtype) -> int:
    return {4: 8, 2: 16, 1: 32}.get(jnp.dtype(dtype).itemsize, 8)


def _vmem_params():
    """(working-set budget, vmem_limit_bytes, physical capacity) per generation."""
    try:
        cap = int(getattr(pltpu.get_tpu_info(), "vmem_capacity_bytes", 64 << 20))
    except Exception:
        cap = 64 << 20
    if cap >= (96 << 20):            # v5e / v6e class: 128 MiB physical
        return 44 << 20, 64 << 20, cap
    return 20 << 20, 40 << 20, cap   # v7x class: 64 MiB physical


def zoom_forward(a: jax.Array, zoom: float = 1.0, *,
                 max_rows_per_tile: int = 512, max_batch: int = 8) -> jax.Array:
    assert a.ndim == 4
    if zoom == 1.0:
        return a

    N, C, H, W = (int(d) for d in a.shape)
    H_out = int(math.floor(H * zoom))
    W_out = int(math.floor(W * zoom))
    assert H_out > 0 and W_out > 0, "zoom too small for this input"

    src_h = _nearest_src_indices(H_out, H, zoom)
    src_w = _nearest_src_indices(W_out, W, zoom)

    out_dtype = a.dtype
    if a.dtype == jnp.float32 or a.dtype == jnp.bfloat16:
        cdt = a.dtype
    else:
        # exact for uint8/int16/fp16 (pure gather); int32 magnitudes > 2**24 lose bits
        cdt = jnp.float32
    in_es = jnp.dtype(a.dtype).itemsize
    c_es = jnp.dtype(cdt).itemsize
    sub_in = _sublane_multiple(a.dtype)
    sub_c = _sublane_multiple(cdt)

    budget, vmem_limit, vmem_cap = _vmem_params()

    # ---- H plan: output-row tiles + (at most two) aligned input row windows ----
    t_cap = max(sub_in, (max_rows_per_tile // sub_in) * sub_in)

    def plan(t_h):
        n_tiles = pl.cdiv(H_out, t_h)
        ext = np.full((n_tiles * t_h,), int(src_h[-1]), dtype=np.int64)
        ext[:H_out] = src_h
        ext = ext.reshape(n_tiles, t_h)
        first = ext[:, 0]
        span_max = int((ext.max(axis=1) - first + 1).max())
        t_hin = max(sub_in, _round_up(span_max, sub_in))
        if t_hin >= H:
            t_hin = H
        n_blk = pl.cdiv(H, t_hin)
        two = n_blk > 1
        n_win = 2 if two else 1
        # per-image double-buffered blocks + (rough) intermediate values
        per_img = 2 * (n_win * t_hin * W * in_es + t_h * W_out * in_es)
        per_img += n_win * t_hin * max(W, W_out) * 4 + t_h * max(W, W_out) * 4
        fixed = 2 * (n_win * t_h * t_hin * c_es + W * W_out * c_es)
        return dict(T_h=t_h, n_h_tiles=n_tiles, ext=ext, first=first,
                    T_hin=t_hin, n_blk=n_blk, two=two, n_win=n_win,
                    per_img=per_img, fixed=fixed)

    T_h = H_out if H_out <= t_cap else t_cap
    p = plan(T_h)
    while (p["fixed"] + p["per_img"]) > budget and T_h > sub_in:
        new_t = max(sub_in, ((T_h // 2) // sub_in) * sub_in)
        if new_t == T_h:
            break
        T_h = new_t
        p = plan(T_h)

    T_h = p["T_h"]
    n_h_tiles = p["n_h_tiles"]
    T_hin = p["T_hin"]
    n_blk = p["n_blk"]
    two_blocks = p["two"]
    n_win = p["n_win"]
    last_blk = n_blk - 1

    rs_np = (p["first"] // T_hin).astype(np.int64)
    local = p["ext"] - rs_np[:, None] * T_hin
    assert local.min() >= 0 and local.max() < 2 * T_hin

    iota = np.arange(T_hin)[None, None, :]
    oa = jnp.asarray((local[:, :, None] == iota).astype(np.float32), dtype=cdt)
    if two_blocks:
        ob = jnp.asarray(((local[:, :, None] - T_hin) == iota).astype(np.float32),
                         dtype=cdt)

    swt_np = np.zeros((W, W_out), dtype=np.float32)
    swt_np[src_w, np.arange(W_out)] = 1.0
    swt = jnp.asarray(swt_np, dtype=cdt)

    rs = jnp.asarray(rs_np.astype(np.int32))

    # ---- batch images per step: largest divisor of N*C under the VMEM budget ----
    NC = N * C
    avail = max(budget - p["fixed"], p["per_img"])
    b_cap = int(max(1, min(max_batch, avail // p["per_img"], NC)))
    B = 1
    for d in range(b_cap, 0, -1):
        if NC % d == 0:
            B = d
            break

    # ---- matmul order & whether the batch can be flattened into the MXU M dim ----
    macs_h_first = n_win * T_h * T_hin * W + T_h * W * W_out
    macs_w_first = n_win * T_hin * W * W_out + T_h * T_hin * W_out
    w_first = macs_w_first < macs_h_first
    flat_rows = T_hin if w_first else T_h
    flatten = (B > 1) and (flat_rows % sub_c == 0)

    mask_rows = (H % T_hin) != 0   # only possible in the multi-window case

    def _load_window(x_ref, blk_idx):
        x = x_ref[...]
        if x.dtype != cdt:
            x = x.astype(cdt)
        if mask_rows:
            valid = H - blk_idx * T_hin            # rows of this window inside [0, H)
            rid = lax.broadcasted_iota(jnp.int32, (B, T_hin, W), 1)
            x = jnp.where(rid < valid, x, jnp.zeros((), cdt))
        return x

    def kernel(rs_ref, *refs):
        if two_blocks:
            oa_ref, ob_ref, xa_ref, xb_ref, swt_ref, o_ref = refs
        else:
            oa_ref, xa_ref, swt_ref, o_ref = refs

        j = pl.program_id(0)
        rsj = rs_ref[j]
        oha = oa_ref[0]
        sw = swt_ref[...]
        xa = _load_window(xa_ref, rsj)
        if two_blocks:
            kbj = jnp.minimum(rsj + 1, last_blk)
            ohb = ob_ref[0]
            xb = _load_window(xb_ref, kbj)

        if flatten and w_first:
            # Big W-selection matmul with the batch flattened into M.
            ya = jnp.dot(xa.reshape(B * T_hin, W), sw,
                         preferred_element_type=jnp.float32)
            ya = ya.astype(cdt).reshape(B, T_hin, W_out)
            if two_blocks:
                yb = jnp.dot(xb.reshape(B * T_hin, W), sw,
                             preferred_element_type=jnp.float32)
                yb = yb.astype(cdt).reshape(B, T_hin, W_out)
            for b in range(B):              # short static loop: one small dot + store
                r = jnp.dot(oha, ya[b], preferred_element_type=jnp.float32)
                if two_blocks:
                    r = r + jnp.dot(ohb, yb[b], preferred_element_type=jnp.float32)
                o_ref[b] = r.astype(o_ref.dtype)
        elif flatten:
            # H-selection per image, then one big W matmul over the flattened batch.
            pieces = []
            for b in range(B):
                r = jnp.dot(oha, xa[b], preferred_element_type=jnp.float32)
                if two_blocks:
                    r = r + jnp.dot(ohb, xb[b], preferred_element_type=jnp.float32)
                pieces.append(r.astype(cdt))
            rows = pieces[0] if B == 1 else jnp.concatenate(pieces, axis=0)
            out = jnp.dot(rows, sw, preferred_element_type=jnp.float32)
            o_ref[...] = out.reshape(B, T_h, W_out).astype(o_ref.dtype)
        else:
            # Tiny / sublane-unaligned shapes: exact per-image fallback.
            for b in range(B):
                if w_first:
                    ya_b = jnp.dot(xa[b], sw,
                                   preferred_element_type=jnp.float32).astype(cdt)
                    r = jnp.dot(oha, ya_b, preferred_element_type=jnp.float32)
                    if two_blocks:
                        yb_b = jnp.dot(xb[b], sw,
                                       preferred_element_type=jnp.float32).astype(cdt)
                        r = r + jnp.dot(ohb, yb_b, preferred_element_type=jnp.float32)
                else:
                    r = jnp.dot(oha, xa[b], preferred_element_type=jnp.float32)
                    if two_blocks:
                        r = r + jnp.dot(ohb, xb[b], preferred_element_type=jnp.float32)
                    r = jnp.dot(r.astype(cdt), sw, preferred_element_type=jnp.float32)
                o_ref[b] = r.astype(o_ref.dtype)

    x = a.reshape(NC, H, W)   # leading-dim merge only: no copy, no dtype cast

    oa_spec = pl.BlockSpec((1, T_h, T_hin), lambda j, g, rs_r: (j, 0, 0))
    ob_spec = pl.BlockSpec((1, T_h, T_hin), lambda j, g, rs_r: (j, 0, 0))
    xa_spec = pl.BlockSpec((B, T_hin, W), lambda j, g, rs_r: (g, rs_r[j], 0))
    xb_spec = pl.BlockSpec(
        (B, T_hin, W),
        lambda j, g, rs_r: (g, jnp.minimum(rs_r[j] + 1, last_blk), 0))
    swt_spec = pl.BlockSpec((W, W_out), lambda j, g, rs_r: (0, 0))
    out_spec = pl.BlockSpec((B, T_h, W_out), lambda j, g, rs_r: (g, j, 0))

    if two_blocks:
        in_specs = [oa_spec, ob_spec, xa_spec, xb_spec, swt_spec]
        operands = (rs, oa, ob, x, x, swt)
    else:
        in_specs = [oa_spec, xa_spec, swt_spec]
        operands = (rs, oa, x, swt)

    grid = (n_h_tiles, NC // B)
    steps = n_h_tiles * (NC // B)
    macs = macs_w_first if w_first else macs_h_first
    cost = pl.CostEstimate(
        flops=int(2 * B * macs * steps),
        transcendentals=0,
        bytes_accessed=int(steps * B * (n_win * T_hin * W * in_es + T_h * W_out * in_es)
                           + n_h_tiles * n_win * T_h * T_hin * c_es
                           + W * W_out * c_es))

    need = p["fixed"] + B * p["per_img"]
    if need > budget:
        vmem_limit = min(int(vmem_cap * 0.9), max(vmem_limit, int(need * 1.25)))

    out = pl.pallas_call(
        kernel,
        out_shape=jax.ShapeDtypeStruct((NC, H_out, W_out), out_dtype),
        grid_spec=pltpu.PrefetchScalarGridSpec(
            num_scalar_prefetch=1,
            grid=grid,
            in_specs=in_specs,
            out_specs=out_spec,
        ),
        compiler_params=pltpu.CompilerParams(
            dimension_semantics=("parallel", "parallel"),
            vmem_limit_bytes=int(vmem_limit)),
        cost_estimate=cost,
    )(*operands)

    return out.reshape(N, C, H_out, W_out)


def _reference_zoom(a: np.ndarray, zoom: float) -> np.ndarray:
    if zoom == 1.0:
        return a
    N, C, H, W = a.shape
    H_out = int(math.floor(H * zoom))
    W_out = int(math.floor(W * zoom))
    src_h = _nearest_src_indices(H_out, H, zoom)
    src_w = _nearest_src_indices(W_out, W, zoom)
    return a[:, :, src_h][:, :, :, src_w]


if __name__ == "__main__":
    k1, k2, k3 = jax.random.split(jax.random.PRNGKey(0), 3)
    x = jax.random.normal(k1, (2, 4, 16, 16), dtype=jnp.float32)

    ok = True

    # zoom == 1.0 : identity passthrough
    y1 = jax.block_until_ready(zoom_forward(x, zoom=1.0))
    ok &= bool(np.allclose(np.asarray(y1), np.asarray(x)))

    # downscale, integer upscale, non-integer upscale, unaligned H_out (fallback path)
    for z in (0.5, 2.0, 1.5, 1.25):
        y = jax.block_until_ready(zoom_forward(x, zoom=z))
        ref = _reference_zoom(np.asarray(x), z)
        ok &= (y.shape == ref.shape)
        ok &= bool(np.allclose(np.asarray(y), ref))

    # non-square case with strong upscale: exercises the W-selection-first path
    xw = jax.random.normal(k2, (2, 3, 16, 32), dtype=jnp.float32)
    yw = jax.block_until_ready(zoom_forward(xw, zoom=4.0))
    refw = _reference_zoom(np.asarray(xw), 4.0)
    ok &= (yw.shape == refw.shape)
    ok &= bool(np.allclose(np.asarray(yw), refw))

    # larger case: exercises H_out tiling, the two-window straddle path, ragged
    # edge input blocks (mask), ragged output tiles, and both matmul orders.
    xb = jax.random.normal(k3, (1, 2, 400, 256), dtype=jnp.float32)
    for z, mr in ((1.3, 128), (3.0, 256)):
        yb = jax.block_until_ready(zoom_forward(xb, zoom=z, max_rows_per_tile=mr))
        refb = _reference_zoom(np.asarray(xb), z)
        ok &= (yb.shape == refb.shape)
        ok &= bool(np.allclose(np.asarray(yb), refb))

    print("KERNEL_OK" if ok else "KERNEL_MISMATCH")
</pallas_src>

<mosaic_0001>
module attributes {stable_mosaic.version = 11 : i64} {
  func.func @kernel(%arg0: i32, %arg1: i32, %arg2: memref<1xi32, #tpu.memory_space<smem>>, %arg3: memref<1x8x16xf32, #tpu.memory_space<vmem>>, %arg4: memref<8x16x16xf32, #tpu.memory_space<vmem>>, %arg5: memref<16x8xf32, #tpu.memory_space<vmem>>, %arg6: memref<8x8x8xf32, #tpu.memory_space<vmem>>) attributes {dimension_semantics = [#tpu.dimension_semantics<parallel>, #tpu.dimension_semantics<parallel>], iteration_bounds = array<i64: 1, 1>, scalar_prefetch = 1 : i64, scratch_operands = 0 : i64, tpu.core_type = #tpu.core_type<tc>, window_params = [{transform_indices = @transform_0, window_bounds = array<i64: 1, 8, 16>}, {transform_indices = @transform_1, window_bounds = array<i64: 8, 16, 16>}, {pipeline_mode = #tpu.pipeline_mode<synchronous>, transform_indices = @transform_2, window_bounds = array<i64: 16, 8>}, {transform_indices = @transform_3, window_bounds = array<i64: 8, 8, 8>}]} {
    %c0 = arith.constant 0 : index
    %c0_0 = arith.constant 0 : index
    %c0_1 = arith.constant 0 : index
    %0 = vector.load %arg3[%c0, %c0_0, %c0_1] : memref<1x8x16xf32, #tpu.memory_space<vmem>>, vector<1x8x16xf32>
    %1 = vector.shape_cast %0 : vector<1x8x16xf32> to vector<8x16xf32>
    %c0_2 = arith.constant 0 : index
    %c0_3 = arith.constant 0 : index
    %2 = vector.load %arg5[%c0_2, %c0_3] : memref<16x8xf32, #tpu.memory_space<vmem>>, vector<16x8xf32>
    %c0_4 = arith.constant 0 : index
    %c0_5 = arith.constant 0 : index
    %c0_6 = arith.constant 0 : index
    %3 = vector.load %arg4[%c0_4, %c0_5, %c0_6] : memref<8x16x16xf32, #tpu.memory_space<vmem>>, vector<8x16x16xf32>
    %4 = vector.extract_strided_slice %3 {offsets = [0, 0, 0], sizes = [1, 16, 16], strides = [1, 1, 1]} : vector<8x16x16xf32> to vector<1x16x16xf32>
    %5 = vector.shape_cast %4 : vector<1x16x16xf32> to vector<16x16xf32>
    %cst = arith.constant dense<0.000000e+00> : vector<8x16xf32>
    %6 = tpu.matmul %1, %5, %cst {dimension_numbers = #tpu.dot_dimension_numbers<[1], [0], [0], [1], [0, 0, 1, 1], [], []>} : vector<8x16xf32>, vector<16x16xf32>, vector<8x16xf32> -> vector<8x16xf32>
    %7 = vector.extract_strided_slice %3 {offsets = [1, 0, 0], sizes = [1, 16, 16], strides = [1, 1, 1]} : vector<8x16x16xf32> to vector<1x16x16xf32>
    %8 = vector.shape_cast %7 : vector<1x16x16xf32> to vector<16x16xf32>
    %cst_7 = arith.constant dense<0.000000e+00> : vector<8x16xf32>
    %9 = tpu.matmul %1, %8, %cst_7 {dimension_numbers = #tpu.dot_dimension_numbers<[1], [0], [0], [1], [0, 0, 1, 1], [], []>} : vector<8x16xf32>, vector<16x16xf32>, vector<8x16xf32> -> vector<8x16xf32>
    %10 = vector.extract_strided_slice %3 {offsets = [2, 0, 0], sizes = [1, 16, 16], strides = [1, 1, 1]} : vector<8x16x16xf32> to vector<1x16x16xf32>
    %11 = vector.shape_cast %10 : vector<1x16x16xf32> to vector<16x16xf32>
    %cst_8 = arith.constant dense<0.000000e+00> : vector<8x16xf32>
    %12 = tpu.matmul %1, %11, %cst_8 {dimension_numbers = #tpu.dot_dimension_numbers<[1], [0], [0], [1], [0, 0, 1, 1], [], []>} : vector<8x16xf32>, vector<16x16xf32>, vector<8x16xf32> -> vector<8x16xf32>
    %13 = vector.extract_strided_slice %3 {offsets = [3, 0, 0], sizes = [1, 16, 16], strides = [1, 1, 1]} : vector<8x16x16xf32> to vector<1x16x16xf32>
    %14 = vector.shape_cast %13 : vector<1x16x16xf32> to vector<16x16xf32>
    %cst_9 = arith.constant dense<0.000000e+00> : vector<8x16xf32>
    %15 = tpu.matmul %1, %14, %cst_9 {dimension_numbers = #tpu.dot_dimension_numbers<[1], [0], [0], [1], [0, 0, 1, 1], [], []>} : vector<8x16xf32>, vector<16x16xf32>, vector<8x16xf32> -> vector<8x16xf32>
    %16 = vector.extract_strided_slice %3 {offsets = [4, 0, 0], sizes = [1, 16, 16], strides = [1, 1, 1]} : vector<8x16x16xf32> to vector<1x16x16xf32>
    %17 = vector.shape_cast %16 : vector<1x16x16xf32> to vector<16x16xf32>
    %cst_10 = arith.constant dense<0.000000e+00> : vector<8x16xf32>
    %18 = tpu.matmul %1, %17, %cst_10 {dimension_numbers = #tpu.dot_dimension_numbers<[1], [0], [0], [1], [0, 0, 1, 1], [], []>} : vector<8x16xf32>, vector<16x16xf32>, vector<8x16xf32> -> vector<8x16xf32>
    %19 = vector.extract_strided_slice %3 {offsets = [5, 0, 0], sizes = [1, 16, 16], strides = [1, 1, 1]} : vector<8x16x16xf32> to vector<1x16x16xf32>
    %20 = vector.shape_cast %19 : vector<1x16x16xf32> to vector<16x16xf32>
    %cst_11 = arith.constant dense<0.000000e+00> : vector<8x16xf32>
    %21 = tpu.matmul %1, %20, %cst_11 {dimension_numbers = #tpu.dot_dimension_numbers<[1], [0], [0], [1], [0, 0, 1, 1], [], []>} : vector<8x16xf32>, vector<16x16xf32>, vector<8x16xf32> -> vector<8x16xf32>
    %22 = vector.extract_strided_slice %3 {offsets = [6, 0, 0], sizes = [1, 16, 16], strides = [1, 1, 1]} : vector<8x16x16xf32> to vector<1x16x16xf32>
    %23 = vector.shape_cast %22 : vector<1x16x16xf32> to vector<16x16xf32>
    %cst_12 = arith.constant dense<0.000000e+00> : vector<8x16xf32>
    %24 = tpu.matmul %1, %23, %cst_12 {dimension_numbers = #tpu.dot_dimension_numbers<[1], [0], [0], [1], [0, 0, 1, 1], [], []>} : vector<8x16xf32>, vector<16x16xf32>, vector<8x16xf32> -> vector<8x16xf32>
    %25 = vector.extract_strided_slice %3 {offsets = [7, 0, 0], sizes = [1, 16, 16], strides = [1, 1, 1]} : vector<8x16x16xf32> to vector<1x16x16xf32>
    %26 = vector.shape_cast %25 : vector<1x16x16xf32> to vector<16x16xf32>
    %cst_13 = arith.constant dense<0.000000e+00> : vector<8x16xf32>
    %27 = tpu.matmul %1, %26, %cst_13 {dimension_numbers = #tpu.dot_dimension_numbers<[1], [0], [0], [1], [0, 0, 1, 1], [], []>} : vector<8x16xf32>, vector<16x16xf32>, vector<8x16xf32> -> vector<8x16xf32>
    %28 = tpu.concatenate %6, %9, %12, %15, %18, %21, %24, %27 in 0 : vector<8x16xf32>, vector<8x16xf32>, vector<8x16xf32>, vector<8x16xf32>, vector<8x16xf32>, vector<8x16xf32>, vector<8x16xf32>, vector<8x16xf32> -> vector<64x16xf32>
    %cst_14 = arith.constant dense<0.000000e+00> : vector<64x8xf32>
    %29 = tpu.matmul %28, %2, %cst_14 {dimension_numbers = #tpu.dot_dimension_numbers<[1], [0], [0], [1], [0, 0, 1, 1], [], []>} : vector<64x16xf32>, vector<16x8xf32>, vector<64x8xf32> -> vector<64x8xf32>
    %30 = vector.shape_cast %29 : vector<64x8xf32> to vector<8x8x8xf32>
    %c0_15 = arith.constant 0 : index
    %c0_16 = arith.constant 0 : index
    %c0_17 = arith.constant 0 : index
    %31 = vector.load %arg6[%c0_15, %c0_16, %c0_17] : memref<8x8x8xf32, #tpu.memory_space<vmem>>, vector<8x8x8xf32>
    tpu.vector_store %arg6[%c0_15, %c0_16, %c0_17], %30 {strides = array<i32>} : memref<8x8x8xf32, #tpu.memory_space<vmem>>, vector<8x8x8xf32>,
    return
  }
  func.func @transform_0(%arg0: i32, %arg1: i32, %arg2: memref<1xi32, #tpu.memory_space<smem>>) -> (i32, i32, i32) {
    %c0_i32 = arith.constant 0 : i32
    %c0_i32_0 = arith.constant 0 : i32
    %c0_i32_1 = arith.constant 0 : i32
    return %arg0, %c0_i32, %c0_i32_0 : i32, i32, i32
  }
  func.func @transform_1(%arg0: i32, %arg1: i32, %arg2: memref<1xi32, #tpu.memory_space<smem>>) -> (i32, i32, i32) {
    %0 = arith.index_cast %arg0 : i32 to index
    %1 = memref.load %arg2[%0] : memref<1xi32, #tpu.memory_space<smem>>
    %c0_i32 = arith.constant 0 : i32
    %c0_i32_0 = arith.constant 0 : i32
    return %arg1, %1, %c0_i32 : i32, i32, i32
  }
  func.func @transform_2(%arg0: i32, %arg1: i32, %arg2: memref<1xi32, #tpu.memory_space<smem>>) -> (i32, i32) {
    %c0_i32 = arith.constant 0 : i32
    %c0_i32_0 = arith.constant 0 : i32
    %c0_i32_1 = arith.constant 0 : i32
    return %c0_i32, %c0_i32_0 : i32, i32
  }
  func.func @transform_3(%arg0: i32, %arg1: i32, %arg2: memref<1xi32, #tpu.memory_space<smem>>) -> (i32, i32, i32) {
    %c0_i32 = arith.constant 0 : i32
    %c0_i32_0 = arith.constant 0 : i32
    return %arg1, %arg0, %c0_i32 : i32, i32, i32
  }
}

</mosaic_0001>

<llo_original>
// kernel: tpu_custom_call.1
$region0: #{tpu_custom_call.1}
  #allocation0 [shape = 'u32[]', space=smem, size = 0x4, offset = 0x4, fixed_abs, tag = 'smem constant byte address 0x4 - core index']
  #allocation1 [shape = 'u32[144,128]{1,0:T(1,128)}', space=vmem, size = 0x12000, scoped, tag = 'internal scratch']
  #allocation2 [shape = 's32[1]{0}', space=sflag, size = 0x4, scoped, tag = 'scoped memory for tpu_custom_call.1']
  #allocation3 [shape = 's32[1]{0:T(128)S(6)}', space=smem, size = 0x200, scoped, tag = 'prefetched SMEM operand 0']
  %s0 = inlined_call_operand.<no memory space> [shape: s32[1], index: 0, kind: input, shape index: {}]
  %s1 = inlined_call_operand.vmem [shape: f32[1,8,16], index: 1, kind: input, shape index: {}]
  %s2 = inlined_call_operand.hbm [shape: f32[8,16,16], index: 2, kind: input, shape index: {}]
  %s3 = inlined_call_operand.vmem [shape: f32[16,8], index: 3, kind: input, shape index: {}]
  %s4 = inlined_call_operand.hbm [shape: f32[8,8,8], index: 4, kind: output, shape index: {}]
  %s5 = sld [smem:[#allocation0]]
  $region26: #{tpu_custom_call.1} parent=0
    _
  %s7 = ssub.s32 1, %s5
  %s8 = scalar_select 0, %s7, %s5
  %9 = sst [smem:[#allocation3]] %s0
  $region1: #{tpu_custom_call.1} parent=0
    #allocation4 [shape = 'u8[65536]{0}', space=vmem, size = 0x10000, scoped, tag = 'input window, operand 2, single buffered']
    #allocation5 [shape = 's32[1]{0}', space=sflag, size = 0x4, scoped, tag = 'scoped memory for tpu_custom_call.1']
    #allocation6 [shape = 's32[1]{0}', space=sflag, size = 0x4, scoped, tag = 'scoped memory for tpu_custom_call.1']
    #allocation7 [shape = 'u8[32768]{0}', space=vmem, size = 0x8000, scoped, tag = 'output window, operand 0, single buffered']
    %10 = vsyncpa [#allocation5], 0
    %11 = vsyncpa [#allocation6], 0
    // Predicated region
    $region2: #{tpu_custom_call.1} parent=1 // pred_check
      _
    $region3: #{tpu_custom_call.1} parent=1 // pred_check_branch
      %13 = sbr.rel (0) target = $region5
    $region4: #{tpu_custom_call.1} parent=1 // pred_region
      _
    $region5: #{tpu_custom_call.1} parent=1 // pred_fallthru
      _
    // Predicated region
    $region6: #{tpu_custom_call.1} parent=1 // pred_check
      _
    $region7: #{tpu_custom_call.1} parent=1 // pred_check_branch
      %15 = sbr.rel (0) target = $region9
    $region8: #{tpu_custom_call.1} parent=1 // pred_region
      %s16 = sld [smem:[#allocation3]]
      %s17 = smul.u32 2, %s16
      %s19 = ssub.s32 2048, 2048
      %20 = vsyncadd [#allocation5], %s19
      %s21 = smul.addr %s17, 128
      %s22 = scalar_lea.hbm %s2, %s21
      %s23 = sshll.u32 [#allocation4], 4
      %s24 = int_to_ptr.vmem [resolvable:$true] %s23
      %29 = dma.hbm_to_vmem [thread:$0]  %s22, 2048, %s24, [#allocation5], 128, 128, 8
    $region9: #{tpu_custom_call.1} parent=1 // pred_fallthru
      _
    // Predicated region
    $region10: #{tpu_custom_call.1} parent=1 // pred_check
      _
    $region11: #{tpu_custom_call.1} parent=1 // pred_check_branch
      %31 = sbr.rel (0) target = $region13
    $region12: #{tpu_custom_call.1} parent=1 // pred_region
      _
    $region13: #{tpu_custom_call.1} parent=1 // pred_fallthru
      _
    // Predicated region
    $region14: #{tpu_custom_call.1} parent=1 // pred_check
      _
    $region15: #{tpu_custom_call.1} parent=1 // pred_check_branch
      %33 = sbr.rel (0) target = $region17
    $region16: #{tpu_custom_call.1} parent=1 // pred_region
      %34 = dma.done [#allocation5], 2048
    $region17: #{tpu_custom_call.1} parent=1 // pred_fallthru
      _
    %s35 = sld [smem:[#allocation3]]
    %s36 = smul.u32 2, %s35
    %v37 = vld [vmem:[%s1] sm:$0xff]
    %v38 = vld [vmem:[%s3] sm:$0xff]
    %v39 = vld [vmem:[%s3 + $0x8] sm:$0xff]
    %v40 = vld [vmem:[#allocation4] sm:$0xff]
    %v41 = vld [vmem:[#allocation4 + $0x8] sm:$0xff]
    %v42 = vld [vmem:[#allocation4 + $0x10] sm:$0xff]
    %v43 = vld [vmem:[#allocation4 + $0x18] sm:$0xff]
    %v44 = vld [vmem:[#allocation4 + $0x20] sm:$0xff]
    %v45 = vld [vmem:[#allocation4 + $0x28] sm:$0xff]
    %v46 = vld [vmem:[#allocation4 + $0x30] sm:$0xff]
    %v47 = vld [vmem:[#allocation4 + $0x38] sm:$0xff]
    %v48 = vld [vmem:[#allocation4 + $0x40] sm:$0xff]
    %v49 = vld [vmem:[#allocation4 + $0x48] sm:$0xff]
    %v50 = vld [vmem:[#allocation4 + $0x50] sm:$0xff]
    %v51 = vld [vmem:[#allocation4 + $0x58] sm:$0xff]
    %v52 = vld [vmem:[#allocation4 + $0x60] sm:$0xff]
    %v53 = vld [vmem:[#allocation4 + $0x68] sm:$0xff]
    %v54 = vld [vmem:[#allocation4 + $0x70] sm:$0xff]
    %v55 = vld [vmem:[#allocation4 + $0x78] sm:$0xff]
    %vm56 = vcmask 130048
    %v58 = vsel %vm56, %v37, 0
    %60 = vmatprep.subr.mxu0 0.0
    %61 = vmatpush1.msra.mxu0 %v40
    %62 = vmatprep.subr.mxu0 0.0
    %63 = vmatpush1.msra.mxu0 %v41
    %64 = vmatprep.subr.mxu0 0.0
    %65 = vmatpush1.msra.mxu0 0.0
    %66 = vmatprep.subr.mxu0 0.0
    %67 = vmatpush1.msra.mxu0 0.0
    %68 = vmatprep.subr.mxu0 0.0
    %69 = vmatpush1.msra.mxu0 0.0
    %70 = vmatprep.subr.mxu0 0.0
    %71 = vmatpush1.msra.mxu0 0.0
    %72 = vmatprep.subr.mxu0 0.0
    %73 = vmatpush1.msra.mxu0 0.0
    %74 = vmatprep.subr.mxu0 0.0
    %75 = vmatpush1.msra.mxu0 0.0
    %76 = vmatprep.subr.mxu0 0.0
    %77 = vmatpush1.msra.mxu0 0.0
    %78 = vmatprep.subr.mxu0 0.0
    %79 = vmatpush1.msra.mxu0 0.0
    %80 = vmatprep.subr.mxu0 0.0
    %81 = vmatpush1.msra.mxu0 0.0
    %82 = vmatprep.subr.mxu0 0.0
    %83 = vmatpush1.msra.mxu0 0.0
    %84 = vmatprep.subr.mxu0 0.0
    %85 = vmatpush1.msra.mxu0 0.0
    %86 = vmatprep.subr.mxu0 0.0
    %87 = vmatpush1.msra.mxu0 0.0
    %88 = vmatprep.subr.mxu0 0.0
    %89 = vmatpush1.msra.mxu0 0.0
    %90 = vmatprep.subr.mxu0 0.0
    %91 = vmatpush1.msra.mxu0 0.0
    %92 = vmatprep.subr.mxu0 0.0
    %93 = vmatpush1.msra.mxu0 0.0
    %94 = vmatprep.subr.mxu0 0.0
    %95 = vmatpush1.msra.mxu0 0.0
    %96 = vmatprep.subr.mxu0 0.0
    %97 = vmatpush1.msra.mxu0 0.0
    %98 = vmatprep.subr.mxu0 0.0
    %99 = vmatpush1.msra.mxu0 0.0
    %100 = vmatprep.subr.mxu0 0.0
    %101 = vmatpush1.msra.mxu0 0.0
    %102 = vmatprep.subr.mxu0 0.0
    %103 = vmatpush1.msra.mxu0 0.0
    %104 = vmatprep.subr.mxu0 0.0
    %105 = vmatpush1.msra.mxu0 0.0
    %106 = vmatprep.subr.mxu0 0.0
    %107 = vmatpush1.msra.mxu0 0.0
    %108 = vmatprep.subr.mxu0 0.0
    %109 = vmatpush1.msra.mxu0 0.0
    %110 = vmatprep.subr.mxu0 0.0
    %111 = vmatpush1.msra.mxu0 0.0
    %112 = vmatprep.subr.mxu0 0.0
    %113 = vmatpush1.msra.mxu0 0.0
    %114 = vmatprep.subr.mxu0 0.0
    %115 = vmatpush1.msra.mxu0 0.0
    %116 = vmatprep.subr.mxu0 0.0
    %117 = vmatpush1.msra.mxu0 0.0
    %118 = vmatprep.subr.mxu0 0.0
    %119 = vmatpush1.msra.mxu0 0.0
    %120 = vmatprep.subr.mxu0 0.0
    %121 = vmatpush1.msra.mxu0 0.0
    %122 = vmatprep.subr.mxu0 0.0
    %123 = vmatpush1.msra.mxu0 0.0
    %124 = vmatprep.mubr.f32.mxu0 0.0
    %125 = vmatmul.mubr.f32.gmra.mrb[0].mxu0 %v58
    %v126 = vpop.f32.mrb[0].mxu0
    %v127 = vadd.f32 0.0, %v126
    %v128 = vpop.f32.mrb[0].mxu0
    %129 = vdwg.mxu0
    %130 = vmatprep.subr.mxu0 0.0
    %131 = vmatpush1.msra.mxu0 %v42
    %132 = vmatprep.subr.mxu0 0.0
    %133 = vmatpush1.msra.mxu0 %v43
    %134 = vmatprep.subr.mxu0 0.0
    %135 = vmatpush1.msra.mxu0 0.0
    %136 = vmatprep.subr.mxu0 0.0
    %137 = vmatpush1.msra.mxu0 0.0
    %138 = vmatprep.subr.mxu0 0.0
    %139 = vmatpush1.msra.mxu0 0.0
    %140 = vmatprep.subr.mxu0 0.0
    %141 = vmatpush1.msra.mxu0 0.0
    %142 = vmatprep.subr.mxu0 0.0
    %143 = vmatpush1.msra.mxu0 0.0
    %144 = vmatprep.subr.mxu0 0.0
    %145 = vmatpush1.msra.mxu0 0.0
    %146 = vmatprep.subr.mxu0 0.0
    %147 = vmatpush1.msra.mxu0 0.0
    %148 = vmatprep.subr.mxu0 0.0
    %149 = vmatpush1.msra.mxu0 0.0
    %150 = vmatprep.subr.mxu0 0.0
    %151 = vmatpush1.msra.mxu0 0.0
    %152 = vmatprep.subr.mxu0 0.0
    %153 = vmatpush1.msra.mxu0 0.0
    %154 = vmatprep.subr.mxu0 0.0
    %155 = vmatpush1.msra.mxu0 0.0
    %156 = vmatprep.subr.mxu0 0.0
    %157 = vmatpush1.msra.mxu0 0.0
    %158 = vmatprep.subr.mxu0 0.0
    %159 = vmatpush1.msra.mxu0 0.0
    %160 = vmatprep.subr.mxu0 0.0
    %161 = vmatpush1.msra.mxu0 0.0
    %162 = vmatprep.subr.mxu0 0.0
    %163 = vmatpush1.msra.mxu0 0.0
    %164 = vmatprep.subr.mxu0 0.0
    %165 = vmatpush1.msra.mxu0 0.0
    %166 = vmatprep.subr.mxu0 0.0
    %167 = vmatpush1.msra.mxu0 0.0
    %168 = vmatprep.subr.mxu0 0.0
    %169 = vmatpush1.msra.mxu0 0.0
    %170 = vmatprep.subr.mxu0 0.0
    %171 = vmatpush1.msra.mxu0 0.0
    %172 = vmatprep.subr.mxu0 0.0
    %173 = vmatpush1.msra.mxu0 0.0
    %174 = vmatprep.subr.mxu0 0.0
    %175 = vmatpush1.msra.mxu0 0.0
    %176 = vmatprep.subr.mxu0 0.0
    %177 = vmatpush1.msra.mxu0 0.0
    %178 = vmatprep.subr.mxu0 0.0
    %179 = vmatpush1.msra.mxu0 0.0
    %180 = vmatprep.subr.mxu0 0.0
    %181 = vmatpush1.msra.mxu0 0.0
    %182 = vmatprep.subr.mxu0 0.0
    %183 = vmatpush1.msra.mxu0 0.0
    %184 = vmatprep.subr.mxu0 0.0
    %185 = vmatpush1.msra.mxu0 0.0
    %186 = vmatprep.subr.mxu0 0.0
    %187 = vmatpush1.msra.mxu0 0.0
    %188 = vmatprep.subr.mxu0 0.0
    %189 = vmatpush1.msra.mxu0 0.0
    %190 = vmatprep.subr.mxu0 0.0
    %191 = vmatpush1.msra.mxu0 0.0
    %192 = vmatprep.subr.mxu0 0.0
    %193 = vmatpush1.msra.mxu0 0.0
    %194 = vmatprep.mubr.f32.mxu0 0.0
    %195 = vmatmul.mubr.f32.gmra.mrb[0].mxu0 %v58
    %v196 = vpop.f32.mrb[0].mxu0
    %v197 = vadd.f32 0.0, %v196
    %v198 = vpop.f32.mrb[0].mxu0
    %199 = vdwg.mxu0
    %200 = vmatprep.subr.mxu0 0.0
    %201 = vmatpush1.msra.mxu0 %v44
    %202 = vmatprep.subr.mxu0 0.0
    %203 = vmatpush1.msra.mxu0 %v45
    %204 = vmatprep.subr.mxu0 0.0
    %205 = vmatpush1.msra.mxu0 0.0
    %206 = vmatprep.subr.mxu0 0.0
    %207 = vmatpush1.msra.mxu0 0.0
    %208 = vmatprep.subr.mxu0 0.0
    %209 = vmatpush1.msra.mxu0 0.0
    %210 = vmatprep.subr.mxu0 0.0
    %211 = vmatpush1.msra.mxu0 0.0
    %212 = vmatprep.subr.mxu0 0.0
    %213 = vmatpush1.msra.mxu0 0.0
    %214 = vmatprep.subr.mxu0 0.0
    %215 = vmatpush1.msra.mxu0 0.0
    %216 = vmatprep.subr.mxu0 0.0
    %217 = vmatpush1.msra.mxu0 0.0
    %218 = vmatprep.subr.mxu0 0.0
    %219 = vmatpush1.msra.mxu0 0.0
    %220 = vmatprep.subr.mxu0 0.0
    %221 = vmatpush1.msra.mxu0 0.0
    %222 = vmatprep.subr.mxu0 0.0
    %223 = vmatpush1.msra.mxu0 0.0
    %224 = vmatprep.subr.mxu0 0.0
    %225 = vmatpush1.msra.mxu0 0.0
    %226 = vmatprep.subr.mxu0 0.0
    %227 = vmatpush1.msra.mxu0 0.0
    %228 = vmatprep.subr.mxu0 0.0
    %229 = vmatpush1.msra.mxu0 0.0
    %230 = vmatprep.subr.mxu0 0.0
    %231 = vmatpush1.msra.mxu0 0.0
    %232 = vmatprep.subr.mxu0 0.0
    %233 = vmatpush1.msra.mxu0 0.0
    %234 = vmatprep.subr.mxu0 0.0
    %235 = vmatpush1.msra.mxu0 0.0
    %236 = vmatprep.subr.mxu0 0.0
    %237 = vmatpush1.msra.mxu0 0.0
    %238 = vmatprep.subr.mxu0 0.0
    %239 = vmatpush1.msra.mxu0 0.0
    %240 = vmatprep.subr.mxu0 0.0
    %241 = vmatpush1.msra.mxu0 0.0
    %242 = vmatprep.subr.mxu0 0.0
    %243 = vmatpush1.msra.mxu0 0.0
    %244 = vmatprep.subr.mxu0 0.0
    %245 = vmatpush1.msra.mxu0 0.0
    %246 = vmatprep.subr.mxu0 0.0
    %247 = vmatpush1.msra.mxu0 0.0
    %248 = vmatprep.subr.mxu0 0.0
    %249 = vmatpush1.msra.mxu0 0.0
    %250 = vmatprep.subr.mxu0 0.0
    %251 = vmatpush1.msra.mxu0 0.0
    %252 = vmatprep.subr.mxu0 0.0
    %253 = vmatpush1.msra.mxu0 0.0
    %254 = vmatprep.subr.mxu0 0.0
    %255 = vmatpush1.msra.mxu0 0.0
    %256 = vmatprep.subr.mxu0 0.0
    %257 = vmatpush1.msra.mxu0 0.0
    %258 = vmatprep.subr.mxu0 0.0
    %259 = vmatpush1.msra.mxu0 0.0
    %260 = vmatprep.subr.mxu0 0.0
    %261 = vmatpush1.msra.mxu0 0.0
    %262 = vmatprep.subr.mxu0 0.0
    %263 = vmatpush1.msra.mxu0 0.0
    %264 = vmatprep.mubr.f32.mxu0 0.0
    %265 = vmatmul.mubr.f32.gmra.mrb[0].mxu0 %v58
    %v266 = vpop.f32.mrb[0].mxu0
    %v267 = vadd.f32 0.0, %v266
    %v268 = vpop.f32.mrb[0].mxu0
    %269 = vdwg.mxu0
    %270 = vmatprep.subr.mxu0 0.0
    %271 = vmatpush1.msra.mxu0 %v46
    %272 = vmatprep.subr.mxu0 0.0
    %273 = vmatpush1.msra.mxu0 %v47
    %274 = vmatprep.subr.mxu0 0.0
    %275 = vmatpush1.msra.mxu0 0.0
    %276 = vmatprep.subr.mxu0 0.0
    %277 = vmatpush1.msra.mxu0 0.0
    %278 = vmatprep.subr.mxu0 0.0
    %279 = vmatpush1.msra.mxu0 0.0
    %280 = vmatprep.subr.mxu0 0.0
    %281 = vmatpush1.msra.mxu0 0.0
    %282 = vmatprep.subr.mxu0 0.0
    %283 = vmatpush1.msra.mxu0 0.0
    %284 = vmatprep.subr.mxu0 0.0
    %285 = vmatpush1.msra.mxu0 0.0
    %286 = vmatprep.subr.mxu0 0.0
    %287 = vmatpush1.msra.mxu0 0.0
    %288 = vmatprep.subr.mxu0 0.0
    %289 = vmatpush1.msra.mxu0 0.0
    %290 = vmatprep.subr.mxu0 0.0
    %291 = vmatpush1.msra.mxu0 0.0
    %292 = vmatprep.subr.mxu0 0.0
    %293 = vmatpush1.msra.mxu0 0.0
    %294 = vmatprep.subr.mxu0 0.0
    %295 = vmatpush1.msra.mxu0 0.0
    %296 = vmatprep.subr.mxu0 0.0
    %297 = vmatpush1.msra.mxu0 0.0
    %298 = vmatprep.subr.mxu0 0.0
    %299 = vmatpush1.msra.mxu0 0.0
    %300 = vmatprep.subr.mxu0 0.0
    %301 = vmatpush1.msra.mxu0 0.0
    %302 = vmatprep.subr.mxu0 0.0
    %303 = vmatpush1.msra.mxu0 0.0
    %304 = vmatprep.subr.mxu0 0.0
    %305 = vmatpush1.msra.mxu0 0.0
    %306 = vmatprep.subr.mxu0 0.0
    %307 = vmatpush1.msra.mxu0 0.0
    %308 = vmatprep.subr.mxu0 0.0
    %309 = vmatpush1.msra.mxu0 0.0
    %310 = vmatprep.subr.mxu0 0.0
    %311 = vmatpush1.msra.mxu0 0.0
    %312 = vmatprep.subr.mxu0 0.0
    %313 = vmatpush1.msra.mxu0 0.0
    %314 = vmatprep.subr.mxu0 0.0
    %315 = vmatpush1.msra.mxu0 0.0
    %316 = vmatprep.subr.mxu0 0.0
    %317 = vmatpush1.msra.mxu0 0.0
    %318 = vmatprep.subr.mxu0 0.0
    %319 = vmatpush1.msra.mxu0 0.0
    %320 = vmatprep.subr.mxu0 0.0
    %321 = vmatpush1.msra.mxu0 0.0
    %322 = vmatprep.subr.mxu0 0.0
    %323 = vmatpush1.msra.mxu0 0.0
    %324 = vmatprep.subr.mxu0 0.0
    %325 = vmatpush1.msra.mxu0 0.0
    %326 = vmatprep.subr.mxu0 0.0
    %327 = vmatpush1.msra.mxu0 0.0
    %328 = vmatprep.subr.mxu0 0.0
    %329 = vmatpush1.msra.mxu0 0.0
    %330 = vmatprep.subr.mxu0 0.0
    %331 = vmatpush1.msra.mxu0 0.0
    %332 = vmatprep.subr.mxu0 0.0
    %333 = vmatpush1.msra.mxu0 0.0
    %334 = vmatprep.mubr.f32.mxu0 0.0
    %335 = vmatmul.mubr.f32.gmra.mrb[0].mxu0 %v58
    %v336 = vpop.f32.mrb[0].mxu0
    %v337 = vadd.f32 0.0, %v336
    %v338 = vpop.f32.mrb[0].mxu0
    %339 = vdwg.mxu0
    %340 = vmatprep.subr.mxu0 0.0
    %341 = vmatpush1.msra.mxu0 %v48
    %342 = vmatprep.subr.mxu0 0.0
    %343 = vmatpush1.msra.mxu0 %v49
    %344 = vmatprep.subr.mxu0 0.0
    %345 = vmatpush1.msra.mxu0 0.0
    %346 = vmatprep.subr.mxu0 0.0
    %347 = vmatpush1.msra.mxu0 0.0
    %348 = vmatprep.subr.mxu0 0.0
    %349 = vmatpush1.msra.mxu0 0.0
    %350 = vmatprep.subr.mxu0 0.0
    %351 = vmatpush1.msra.mxu0 0.0
    %352 = vmatprep.subr.mxu0 0.0
    %353 = vmatpush1.msra.mxu0 0.0
    %354 = vmatprep.subr.mxu0 0.0
    %355 = vmatpush1.msra.mxu0 0.0
    %356 = vmatprep.subr.mxu0 0.0
    %357 = vmatpush1.msra.mxu0 0.0
    %358 = vmatprep.subr.mxu0 0.0
    %359 = vmatpush1.msra.mxu0 0.0
    %360 = vmatprep.subr.mxu0 0.0
    %361 = vmatpush1.msra.mxu0 0.0
    %362 = vmatprep.subr.mxu0 0.0
    %363 = vmatpush1.msra.mxu0 0.0
    %364 = vmatprep.subr.mxu0 0.0
    %365 = vmatpush1.msra.mxu0 0.0
    %366 = vmatprep.subr.mxu0 0.0
    %367 = vmatpush1.msra.mxu0 0.0
    %368 = vmatprep.subr.mxu0 0.0
    %369 = vmatpush1.msra.mxu0 0.0
    %370 = vmatprep.subr.mxu0 0.0
    %371 = vmatpush1.msra.mxu0 0.0
    %372 = vmatprep.subr.mxu0 0.0
    %373 = vmatpush1.msra.mxu0 0.0
    %374 = vmatprep.subr.mxu0 0.0
    %375 = vmatpush1.msra.mxu0 0.0
    %376 = vmatprep.subr.mxu0 0.0
    %377 = vmatpush1.msra.mxu0 0.0
    %378 = vmatprep.subr.mxu0 0.0
    %379 = vmatpush1.msra.mxu0 0.0
    %380 = vmatprep.subr.mxu0 0.0
    %381 = vmatpush1.msra.mxu0 0.0
    %382 = vmatprep.subr.mxu0 0.0
    %383 = vmatpush1.msra.mxu0 0.0
    %384 = vmatprep.subr.mxu0 0.0
    %385 = vmatpush1.msra.mxu0 0.0
    %386 = vmatprep.subr.mxu0 0.0
    %387 = vmatpush1.msra.mxu0 0.0
    %388 = vmatprep.subr.mxu0 0.0
    %389 = vmatpush1.msra.mxu0 0.0
    %390 = vmatprep.subr.mxu0 0.0
    %391 = vmatpush1.msra.mxu0 0.0
    %392 = vmatprep.subr.mxu0 0.0
    %393 = vmatpush1.msra.mxu0 0.0
    %394 = vmatprep.subr.mxu0 0.0
    %395 = vmatpush1.msra.mxu0 0.0
    %396 = vmatprep.subr.mxu0 0.0
    %397 = vmatpush1.msra.mxu0 0.0
    %398 = vmatprep.subr.mxu0 0.0
    %399 = vmatpush1.msra.mxu0 0.0
    %400 = vmatprep.subr.mxu0 0.0
    %401 = vmatpush1.msra.mxu0 0.0
    %402 = vmatprep.subr.mxu0 0.0
    %403 = vmatpush1.msra.mxu0 0.0
    %404 = vmatprep.mubr.f32.mxu0 0.0
    %405 = vmatmul.mubr.f32.gmra.mrb[0].mxu0 %v58
    %v406 = vpop.f32.mrb[0].mxu0
    %v407 = vadd.f32 0.0, %v406
    %v408 = vpop.f32.mrb[0].mxu0
    %409 = vdwg.mxu0
    %410 = vmatprep.subr.mxu0 0.0
    %411 = vmatpush1.msra.mxu0 %v50
    %412 = vmatprep.subr.mxu0 0.0
    %413 = vmatpush1.msra.mxu0 %v51
    %414 = vmatprep.subr.mxu0 0.0
    %415 = vmatpush1.msra.mxu0 0.0
    %416 = vmatprep.subr.mxu0 0.0
    %417 = vmatpush1.msra.mxu0 0.0
    %418 = vmatprep.subr.mxu0 0.0
    %419 = vmatpush1.msra.mxu0 0.0
    %420 = vmatprep.subr.mxu0 0.0
    %421 = vmatpush1.msra.mxu0 0.0
    %422 = vmatprep.subr.mxu0 0.0
    %423 = vmatpush1.msra.mxu0 0.0
    %424 = vmatprep.subr.mxu0 0.0
    %425 = vmatpush1.msra.mxu0 0.0
    %426 = vmatprep.subr.mxu0 0.0
    %427 = vmatpush1.msra.mxu0 0.0
    %428 = vmatprep.subr.mxu0 0.0
    %429 = vmatpush1.msra.mxu0 0.0
    %430 = vmatprep.subr.mxu0 0.0
    %431 = vmatpush1.msra.mxu0 0.0
    %432 = vmatprep.subr.mxu0 0.0
    %433 = vmatpush1.msra.mxu0 0.0
    %434 = vmatprep.subr.mxu0 0.0
    %435 = vmatpush1.msra.mxu0 0.0
    %436 = vmatprep.subr.mxu0 0.0
    %437 = vmatpush1.msra.mxu0 0.0
    %438 = vmatprep.subr.mxu0 0.0
    %439 = vmatpush1.msra.mxu0 0.0
    %440 = vmatprep.subr.mxu0 0.0
    %441 = vmatpush1.msra.mxu0 0.0
    %442 = vmatprep.subr.mxu0 0.0
    %443 = vmatpush1.msra.mxu0 0.0
    %444 = vmatprep.subr.mxu0 0.0
    %445 = vmatpush1.msra.mxu0 0.0
    %446 = vmatprep.subr.mxu0 0.0
    %447 = vmatpush1.msra.mxu0 0.0
    %448 = vmatprep.subr.mxu0 0.0
    %449 = vmatpush1.msra.mxu0 0.0
    %450 = vmatprep.subr.mxu0 0.0
    %451 = vmatpush1.msra.mxu0 0.0
    %452 = vmatprep.subr.mxu0 0.0
    %453 = vmatpush1.msra.mxu0 0.0
    %454 = vmatprep.subr.mxu0 0.0
    %455 = vmatpush1.msra.mxu0 0.0
    %456 = vmatprep.subr.mxu0 0.0
    %457 = vmatpush1.msra.mxu0 0.0
    %458 = vmatprep.subr.mxu0 0.0
    %459 = vmatpush1.msra.mxu0 0.0
    %460 = vmatprep.subr.mxu0 0.0
    %461 = vmatpush1.msra.mxu0 0.0
    %462 = vmatprep.subr.mxu0 0.0
    %463 = vmatpush1.msra.mxu0 0.0
    %464 = vmatprep.subr.mxu0 0.0
    %465 = vmatpush1.msra.mxu0 0.0
    %466 = vmatprep.subr.mxu0 0.0
    %467 = vmatpush1.msra.mxu0 0.0
    %468 = vmatprep.subr.mxu0 0.0
    %469 = vmatpush1.msra.mxu0 0.0
    %470 = vmatprep.subr.mxu0 0.0
    %471 = vmatpush1.msra.mxu0 0.0
    %472 = vmatprep.subr.mxu0 0.0
    %473 = vmatpush1.msra.mxu0 0.0
    %474 = vmatprep.mubr.f32.mxu0 0.0
    %475 = vmatmul.mubr.f32.gmra.mrb[0].mxu0 %v58
    %v476 = vpop.f32.mrb[0].mxu0
    %v477 = vadd.f32 0.0, %v476
    %v478 = vpop.f32.mrb[0].mxu0
    %479 = vdwg.mxu0
    %480 = vmatprep.subr.mxu0 0.0
    %481 = vmatpush1.msra.mxu0 %v52
    %482 = vmatprep.subr.mxu0 0.0
    %483 = vmatpush1.msra.mxu0 %v53
    %484 = vmatprep.subr.mxu0 0.0
    %485 = vmatpush1.msra.mxu0 0.0
    %486 = vmatprep.subr.mxu0 0.0
    %487 = vmatpush1.msra.mxu0 0.0
    %488 = vmatprep.subr.mxu0 0.0
    %489 = vmatpush1.msra.mxu0 0.0
    %490 = vmatprep.subr.mxu0 0.0
    %491 = vmatpush1.msra.mxu0 0.0
    %492 = vmatprep.subr.mxu0 0.0
    %493 = vmatpush1.msra.mxu0 0.0
    %494 = vmatprep.subr.mxu0 0.0
    %495 = vmatpush1.msra.mxu0 0.0
    %496 = vmatprep.subr.mxu0 0.0
    %497 = vmatpush1.msra.mxu0 0.0
    %498 = vmatprep.subr.mxu0 0.0
    %499 = vmatpush1.msra.mxu0 0.0
    %500 = vmatprep.subr.mxu0 0.0
    %501 = vmatpush1.msra.mxu0 0.0
    %502 = vmatprep.subr.mxu0 0.0
    %503 = vmatpush1.msra.mxu0 0.0
    %504 = vmatprep.subr.mxu0 0.0
    %505 = vmatpush1.msra.mxu0 0.0
    %506 = vmatprep.subr.mxu0 0.0
    %507 = vmatpush1.msra.mxu0 0.0
    %508 = vmatprep.subr.mxu0 0.0
    %509 = vmatpush1.msra.mxu0 0.0
    %510 = vmatprep.subr.mxu0 0.0
    %511 = vmatpush1.msra.mxu0 0.0
    %512 = vmatprep.subr.mxu0 0.0
    %513 = vmatpush1.msra.mxu0 0.0
    %514 = vmatprep.subr.mxu0 0.0
    %515 = vmatpush1.msra.mxu0 0.0
    %516 = vmatprep.subr.mxu0 0.0
    %517 = vmatpush1.msra.mxu0 0.0
    %518 = vmatprep.subr.mxu0 0.0
    %519 = vmatpush1.msra.mxu0 0.0
    %520 = vmatprep.subr.mxu0 0.0
    %521 = vmatpush1.msra.mxu0 0.0
    %522 = vmatprep.subr.mxu0 0.0
    %523 = vmatpush1.msra.mxu0 0.0
    %524 = vmatprep.subr.mxu0 0.0
    %525 = vmatpush1.msra.mxu0 0.0
    %526 = vmatprep.subr.mxu0 0.0
    %527 = vmatpush1.msra.mxu0 0.0
    %528 = vmatprep.subr.mxu0 0.0
    %529 = vmatpush1.msra.mxu0 0.0
    %530 = vmatprep.subr.mxu0 0.0
    %531 = vmatpush1.msra.mxu0 0.0
    %532 = vmatprep.subr.mxu0 0.0
    %533 = vmatpush1.msra.mxu0 0.0
    %534 = vmatprep.subr.mxu0 0.0
    %535 = vmatpush1.msra.mxu0 0.0
    %536 = vmatprep.subr.mxu0 0.0
    %537 = vmatpush1.msra.mxu0 0.0
    %538 = vmatprep.subr.mxu0 0.0
    %539 = vmatpush1.msra.mxu0 0.0
    %540 = vmatprep.subr.mxu0 0.0
    %541 = vmatpush1.msra.mxu0 0.0
    %542 = vmatprep.subr.mxu0 0.0
    %543 = vmatpush1.msra.mxu0 0.0
    %544 = vmatprep.mubr.f32.mxu0 0.0
    %545 = vmatmul.mubr.f32.gmra.mrb[0].mxu0 %v58
    %v546 = vpop.f32.mrb[0].mxu0
    %v547 = vadd.f32 0.0, %v546
    %v548 = vpop.f32.mrb[0].mxu0
    %549 = vdwg.mxu0
    %550 = vmatprep.subr.mxu0 0.0
    %551 = vmatpush1.msra.mxu0 %v54
    %552 = vmatprep.subr.mxu0 0.0
    %553 = vmatpush1.msra.mxu0 %v55
    %554 = vmatprep.subr.mxu0 0.0
    %555 = vmatpush1.msra.mxu0 0.0
    %556 = vmatprep.subr.mxu0 0.0
    %557 = vmatpush1.msra.mxu0 0.0
    %558 = vmatprep.subr.mxu0 0.0
    %559 = vmatpush1.msra.mxu0 0.0
    %560 = vmatprep.subr.mxu0 0.0
    %561 = vmatpush1.msra.mxu0 0.0
    %562 = vmatprep.subr.mxu0 0.0
    %563 = vmatpush1.msra.mxu0 0.0
    %564 = vmatprep.subr.mxu0 0.0
    %565 = vmatpush1.msra.mxu0 0.0
    %566 = vmatprep.subr.mxu0 0.0
    %567 = vmatpush1.msra.mxu0 0.0
    %568 = vmatprep.subr.mxu0 0.0
    %569 = vmatpush1.msra.mxu0 0.0
    %570 = vmatprep.subr.mxu0 0.0
    %571 = vmatpush1.msra.mxu0 0.0
    %572 = vmatprep.subr.mxu0 0.0
    %573 = vmatpush1.msra.mxu0 0.0
    %574 = vmatprep.subr.mxu0 0.0
    %575 = vmatpush1.msra.mxu0 0.0
    %576 = vmatprep.subr.mxu0 0.0
    %577 = vmatpush1.msra.mxu0 0.0
    %578 = vmatprep.subr.mxu0 0.0
    %579 = vmatpush1.msra.mxu0 0.0
    %580 = vmatprep.subr.mxu0 0.0
    %581 = vmatpush1.msra.mxu0 0.0
    %582 = vmatprep.subr.mxu0 0.0
    %583 = vmatpush1.msra.mxu0 0.0
    %584 = vmatprep.subr.mxu0 0.0
    %585 = vmatpush1.msra.mxu0 0.0
    %586 = vmatprep.subr.mxu0 0.0
    %587 = vmatpush1.msra.mxu0 0.0
    %588 = vmatprep.subr.mxu0 0.0
    %589 = vmatpush1.msra.mxu0 0.0
    %590 = vmatprep.subr.mxu0 0.0
    %591 = vmatpush1.msra.mxu0 0.0
    %592 = vmatprep.subr.mxu0 0.0
    %593 = vmatpush1.msra.mxu0 0.0
    %594 = vmatprep.subr.mxu0 0.0
    %595 = vmatpush1.msra.mxu0 0.0
    %596 = vmatprep.subr.mxu0 0.0
    %597 = vmatpush1.msra.mxu0 0.0
    %598 = vmatprep.subr.mxu0 0.0
    %599 = vmatpush1.msra.mxu0 0.0
    %600 = vmatprep.subr.mxu0 0.0
    %601 = vmatpush1.msra.mxu0 0.0
    %602 = vmatprep.subr.mxu0 0.0
    %603 = vmatpush1.msra.mxu0 0.0
    %604 = vmatprep.subr.mxu0 0.0
    %605 = vmatpush1.msra.mxu0 0.0
    %606 = vmatprep.subr.mxu0 0.0
    %607 = vmatpush1.msra.mxu0 0.0
    %608 = vmatprep.subr.mxu0 0.0
    %609 = vmatpush1.msra.mxu0 0.0
    %610 = vmatprep.subr.mxu0 0.0
    %611 = vmatpush1.msra.mxu0 0.0
    %612 = vmatprep.subr.mxu0 0.0
    %613 = vmatpush1.msra.mxu0 0.0
    %614 = vmatprep.mubr.f32.mxu0 0.0
    %615 = vmatmul.mubr.f32.gmra.mrb[0].mxu0 %v58
    %v616 = vpop.f32.mrb[0].mxu0
    %v617 = vadd.f32 0.0, %v616
    %v618 = vpop.f32.mrb[0].mxu0
    %619 = vdwg.mxu0
    %v621 = vsel %vm56, %v127, 0
    %v624 = vsel %vm56, %v197, 0
    %v627 = vsel %vm56, %v267, 0
    %v630 = vsel %vm56, %v337, 0
    %v633 = vsel %vm56, %v407, 0
    %v636 = vsel %vm56, %v477, 0
    %v639 = vsel %vm56, %v547, 0
    %v642 = vsel %vm56, %v617, 0
    %644 = vmatprep.subr.mxu0 0.0
    %645 = vmatpush1.msra.mxu0 %v38
    %646 = vmatprep.subr.mxu0 0.0
    %647 = vmatpush1.msra.mxu0 %v39
    %648 = vmatprep.subr.mxu0 0.0
    %649 = vmatpush1.msra.mxu0 0.0
    %650 = vmatprep.subr.mxu0 0.0
    %651 = vmatpush1.msra.mxu0 0.0
    %652 = vmatprep.subr.mxu0 0.0
    %653 = vmatpush1.msra.mxu0 0.0
    %654 = vmatprep.subr.mxu0 0.0
    %655 = vmatpush1.msra.mxu0 0.0
    %656 = vmatprep.subr.mxu0 0.0
    %657 = vmatpush1.msra.mxu0 0.0
    %658 = vmatprep.subr.mxu0 0.0
    %659 = vmatpush1.msra.mxu0 0.0
    %660 = vmatprep.subr.mxu0 0.0
    %661 = vmatpush1.msra.mxu0 0.0
    %662 = vmatprep.subr.mxu0 0.0
    %663 = vmatpush1.msra.mxu0 0.0
    %664 = vmatprep.subr.mxu0 0.0
    %665 = vmatpush1.msra.mxu0 0.0
    %666 = vmatprep.subr.mxu0 0.0
    %667 = vmatpush1.msra.mxu0 0.0
    %668 = vmatprep.subr.mxu0 0.0
    %669 = vmatpush1.msra.mxu0 0.0
    %670 = vmatprep.subr.mxu0 0.0
    %671 = vmatpush1.msra.mxu0 0.0
    %672 = vmatprep.subr.mxu0 0.0
    %673 = vmatpush1.msra.mxu0 0.0
    %674 = vmatprep.subr.mxu0 0.0
    %675 = vmatpush1.msra.mxu0 0.0
    %676 = vmatprep.subr.mxu0 0.0
    %677 = vmatpush1.msra.mxu0 0.0
    %678 = vmatprep.subr.mxu0 0.0
    %679 = vmatpush1.msra.mxu0 0.0
    %680 = vmatprep.subr.mxu0 0.0
    %681 = vmatpush1.msra.mxu0 0.0
    %682 = vmatprep.subr.mxu0 0.0
    %683 = vmatpush1.msra.mxu0 0.0
    %684 = vmatprep.subr.mxu0 0.0
    %685 = vmatpush1.msra.mxu0 0.0
    %686 = vmatprep.subr.mxu0 0.0
    %687 = vmatpush1.msra.mxu0 0.0
    %688 = vmatprep.subr.mxu0 0.0
    %689 = vmatpush1.msra.mxu0 0.0
    %690 = vmatprep.subr.mxu0 0.0
    %691 = vmatpush1.msra.mxu0 0.0
    %692 = vmatprep.subr.mxu0 0.0
    %693 = vmatpush1.msra.mxu0 0.0
    %694 = vmatprep.subr.mxu0 0.0
    %695 = vmatpush1.msra.mxu0 0.0
    %696 = vmatprep.subr.mxu0 0.0
    %697 = vmatpush1.msra.mxu0 0.0
    %698 = vmatprep.subr.mxu0 0.0
    %699 = vmatpush1.msra.mxu0 0.0
    %700 = vmatprep.subr.mxu0 0.0
    %701 = vmatpush1.msra.mxu0 0.0
    %702 = vmatprep.subr.mxu0 0.0
    %703 = vmatpush1.msra.mxu0 0.0
    %704 = vmatprep.subr.mxu0 0.0
    %705 = vmatpush1.msra.mxu0 0.0
    %706 = vmatprep.subr.mxu0 0.0
    %707 = vmatpush1.msra.mxu0 0.0
    %708 = vmatprep.mubr.f32.mxu0 0.0
    %709 = vmatmul.mubr.f32.gmra.mrb[0].mxu0 %v621
    %v710 = vpop.f32.mrb[0].mxu0
    %v711 = vadd.f32 0.0, %v710
    %v712 = vpop.f32.mrb[0].mxu0
    %713 = vmatprep.mubr.f32.mxu0 0.0
    %714 = vmatmul.mubr.f32.gmra.mrb[0].mxu0 %v624
    %v715 = vpop.f32.mrb[0].mxu0
    %v716 = vadd.f32 0.0, %v715
    %v717 = vpop.f32.mrb[0].mxu0
    %718 = vmatprep.mubr.f32.mxu0 0.0
    %719 = vmatmul.mubr.f32.gmra.mrb[0].mxu0 %v627
    %v720 = vpop.f32.mrb[0].mxu0
    %v721 = vadd.f32 0.0, %v720
    %v722 = vpop.f32.mrb[0].mxu0
    %723 = vmatprep.mubr.f32.mxu0 0.0
    %724 = vmatmul.mubr.f32.gmra.mrb[0].mxu0 %v630
    %v725 = vpop.f32.mrb[0].mxu0
    %v726 = vadd.f32 0.0, %v725
    %v727 = vpop.f32.mrb[0].mxu0
    %728 = vmatprep.mubr.f32.mxu0 0.0
    %729 = vmatmul.mubr.f32.gmra.mrb[0].mxu0 %v633
    %v730 = vpop.f32.mrb[0].mxu0
    %v731 = vadd.f32 0.0, %v730
    %v732 = vpop.f32.mrb[0].mxu0
    %733 = vmatprep.mubr.f32.mxu0 0.0
    %734 = vmatmul.mubr.f32.gmra.mrb[0].mxu0 %v636
    %v735 = vpop.f32.mrb[0].mxu0
    %v736 = vadd.f32 0.0, %v735
    %v737 = vpop.f32.mrb[0].mxu0
    %738 = vmatprep.mubr.f32.mxu0 0.0
    %739 = vmatmul.mubr.f32.gmra.mrb[0].mxu0 %v639
    %v740 = vpop.f32.mrb[0].mxu0
    %v741 = vadd.f32 0.0, %v740
    %v742 = vpop.f32.mrb[0].mxu0
    %743 = vmatprep.mubr.f32.mxu0 0.0
    %744 = vmatmul.mubr.f32.gmra.mrb[0].mxu0 %v642
    %v745 = vpop.f32.mrb[0].mxu0
    %v746 = vadd.f32 0.0, %v745
    %v747 = vpop.f32.mrb[0].mxu0
    %748 = vdwg.mxu0
    %vm749 = vcmask 64512
    %750 = vst.msk [vmem:[#allocation7] sm:$0xff] %vm749, %v711
    %751 = vst.msk [vmem:[#allocation7 + $0x8] sm:$0xff] %vm749, %v716
    %752 = vst.msk [vmem:[#allocation7 + $0x10] sm:$0xff] %vm749, %v721
    %753 = vst.msk [vmem:[#allocation7 + $0x18] sm:$0xff] %vm749, %v726
    %754 = vst.msk [vmem:[#allocation7 + $0x20] sm:$0xff] %vm749, %v731
    %755 = vst.msk [vmem:[#allocation7 + $0x28] sm:$0xff] %vm749, %v736
    %756 = vst.msk [vmem:[#allocation7 + $0x30] sm:$0xff] %vm749, %v741
    %757 = vst.msk [vmem:[#allocation7 + $0x38] sm:$0xff] %vm749, %v746
    // Predicated region
    $region18: #{tpu_custom_call.1} parent=1 // pred_check
      _
    $region19: #{tpu_custom_call.1} parent=1 // pred_check_branch
      %759 = sbr.rel (0) target = $region21
    $region20: #{tpu_custom_call.1} parent=1 // pred_region
      %s761 = ssub.s32 1024, 1024
      %762 = vsyncadd [#allocation6], %s761
      %s763 = sshll.u32 [#allocation7], 4
      %s764 = int_to_ptr.vmem [resolvable:$true] %s763
      %769 = dma.vmem_to_hbm [thread:$0]  %s764, 1024, %s4, [#allocation6], 128, 128, 8
    $region21: #{tpu_custom_call.1} parent=1 // pred_fallthru
      _
    // Predicated region
    $region22: #{tpu_custom_call.1} parent=1 // pred_check
      _
    $region23: #{tpu_custom_call.1} parent=1 // pred_check_branch
      %771 = sbr.rel (0) target = $region25
    $region24: #{tpu_custom_call.1} parent=1 // pred_region
      %772 = dma.done [#allocation6], 1024
    $region25: #{tpu_custom_call.1} parent=1 // pred_fallthru
      _
    %773 = vsyncpa [#allocation5], 1
    %774 = vsyncpa [#allocation6], 1

</llo_original>
